<compile_context>
chip_gen: v5e
topology: v5e:2x2
jax: 0.10.0
libtpu: 0.0.40
codegen_flags: <defaults>
</compile_context>

<pallas_src>
import functools

import jax
import jax.numpy as jnp
from jax.experimental import pallas as pl
from jax.experimental.pallas import tpu as pltpu


def _round_up(x: int, m: int) -> int:
    return (x + m - 1) // m * m


def _cdiv(a: int, b: int) -> int:
    return (a + b - 1) // b


def _pick_tile(size: int, target: int, align: int) -> int:
    """Pick a tile <= target, multiple of `align`, minimizing padded (dead) work.

    Only tiles in [target/2, target] are considered so we never degenerate into
    many tiny tiles just to avoid a few padded rows.
    """
    target = max(align, (target // align) * align)
    size_a = _round_up(size, align)
    if size_a <= target:
        return size_a
    best_tile, best_pad = align, None
    lo = max(align, (target // 2 // align) * align)
    for tile in range(target, lo - 1, -align):
        pad = _round_up(size_a, tile)
        if best_pad is None or pad < best_pad:
            best_tile, best_pad = tile, pad
    return best_tile


def plan_tiles(batch, d_in, d_out, *, tm=512, tn=512, tk=1024):
    """Tile plan (run once, plain Python).

    Defaults give ~10 MiB double-buffered f32 footprint: fits v5e/v6e default scoped
    VMEM and stays well under v7x's 64 MiB per-core VMEM, with MXU-friendly M/N tiles.
    """
    tm = _pick_tile(batch, tm, 8)      # sublane-aligned batch tile
    tn = _pick_tile(d_out, tn, 128)    # lane-dense output tile
    tk = _pick_tile(d_in, tk, 128)     # lane-aligned reduction tile
    # v7x megacore: make sure at least one *parallel* grid axis has >= 2 blocks.
    if (_round_up(batch, tm) // tm == 1
            and _round_up(d_out, tn) // tn == 1
            and tn % 256 == 0):
        tn //= 2
    return tm, tn, tk


def prepare_linear_params(w, b, *, tn, tk):
    """One-time parameter prep (do this at init, NOT per forward call).

    w: (D_out, D_in) nn.Linear weight -> wt_p: (Kp, Np) padded W^T
    b: (D_out,)                       -> b_p : (1, Np)
    Zero padding keeps the contraction exact; padded N columns are sliced off
    after the kernel.
    """
    d_out, d_in = w.shape
    kp = _round_up(d_in, tk)
    np_ = _round_up(d_out, tn)
    wt_p = jnp.pad(w.T, ((0, kp - d_in), (0, np_ - d_out)))
    b_p = jnp.pad(b.reshape(1, d_out), ((0, 0), (0, np_ - d_out)))
    return wt_p, b_p


def _linear_kernel_f32(x_ref, w_ref, b_ref, o_ref):
    # f32 output: accumulate directly into the VMEM-resident output block
    # (its index_map ignores k, so it persists across the reduction axis).
    k = pl.program_id(2)

    @pl.when(k == 0)
    def _():
        o_ref[...] = jnp.broadcast_to(b_ref[...].astype(o_ref.dtype), o_ref.shape)

    o_ref[...] += jnp.dot(x_ref[...], w_ref[...], preferred_element_type=jnp.float32)


def _linear_kernel_cast(x_ref, w_ref, b_ref, o_ref, acc_ref):
    # Low-precision output: f32 scratch accumulator, single cast/store on last K step.
    k = pl.program_id(2)

    @pl.when(k == 0)
    def _():
        acc_ref[...] = jnp.broadcast_to(b_ref[...].astype(jnp.float32), acc_ref.shape)

    acc_ref[...] += jnp.dot(x_ref[...], w_ref[...], preferred_element_type=jnp.float32)

    @pl.when(k == pl.num_programs(2) - 1)
    def _():
        o_ref[...] = acc_ref[...].astype(o_ref.dtype)


@functools.partial(jax.jit, static_argnames=("d_out", "tm", "tn", "tk"))
def linear_forward(x, wt_p, b_p, *, d_out, tm, tn, tk):
    """y = x @ W^T + b, with W already transposed/padded by prepare_linear_params.

    x: (B, D_in), wt_p: (Kp, Np), b_p: (1, Np). Returns (B, d_out).
    """
    batch, d_in = x.shape
    kp, np_ = wt_p.shape
    out_dtype = x.dtype
    out_itemsize = jnp.dtype(out_dtype).itemsize

    bp_ = _round_up(batch, tm)
    # Only x (the small operand) is padded per call; padded K rows are zero so the
    # matmul stays exact.
    x_p = jnp.pad(x, ((0, bp_ - batch), (0, kp - d_in)))

    grid = (bp_ // tm, np_ // tn, kp // tk)

    out_is_f32 = jnp.dtype(out_dtype) == jnp.dtype(jnp.float32)
    kernel = _linear_kernel_f32 if out_is_f32 else _linear_kernel_cast
    scratch = [] if out_is_f32 else [pltpu.VMEM((tm, tn), jnp.float32)]

    # Double-buffered VMEM footprint -> scoped VMEM limit (capped at v7x's 64 MiB).
    x_it = x_p.dtype.itemsize
    w_it = wt_p.dtype.itemsize
    b_it = b_p.dtype.itemsize
    footprint = (
        2 * (tm * tk * x_it + tk * tn * w_it + tn * b_it)
        + 2 * tm * tn * out_itemsize
        + (0 if out_is_f32 else tm * tn * 4)
    )
    vmem_limit = min(max(32 << 20, int(footprint * 3 // 2)), 64 << 20)

    cost = pl.CostEstimate(
        flops=2 * bp_ * kp * np_,
        transcendentals=0,
        bytes_accessed=(
            x_p.size * x_it + wt_p.size * w_it + b_p.size * b_it
            + bp_ * np_ * out_itemsize
        ),
    )

    out = pl.pallas_call(
        kernel,
        out_shape=jax.ShapeDtypeStruct((bp_, np_), out_dtype),
        grid_spec=pltpu.PrefetchScalarGridSpec(
            num_scalar_prefetch=0,
            grid=grid,
            in_specs=[
                pl.BlockSpec((tm, tk), lambda i, j, k: (i, k)),   # x tile
                pl.BlockSpec((tk, tn), lambda i, j, k: (k, j)),   # W^T tile
                pl.BlockSpec((1, tn), lambda i, j, k: (0, j)),    # bias tile
            ],
            out_specs=pl.BlockSpec((tm, tn), lambda i, j, k: (i, j)),
            scratch_shapes=scratch,
        ),
        compiler_params=pltpu.CompilerParams(
            dimension_semantics=("parallel", "parallel", "arbitrary"),
            vmem_limit_bytes=vmem_limit,
        ),
        cost_estimate=cost,
    )(x_p, wt_p, b_p)

    # Slice off alignment padding outside the kernel.
    return out[:batch, :d_out]


if __name__ == "__main__":
    # Mirrors LinearRegression(input_dim, output_dim).forward(x) at small shapes.
    input_dim, output_dim = 32, 16
    batch = 8

    key = jax.random.PRNGKey(0)
    kx, kw, kb = jax.random.split(key, 3)

    # nn.Linear default init: U(-1/sqrt(in), 1/sqrt(in)) for weight and bias.
    bound = 1.0 / jnp.sqrt(jnp.float32(input_dim))
    w = jax.random.uniform(kw, (output_dim, input_dim), jnp.float32, -bound, bound)
    b = jax.random.uniform(kb, (output_dim,), jnp.float32, -bound, bound)
    x = jax.random.normal(kx, (batch, input_dim), jnp.float32)

    # Plan tiles once, prepare (transpose + pad) parameters once (init-time cost).
    tm, tn, tk = plan_tiles(batch, input_dim, output_dim)
    wt_p, b_p = prepare_linear_params(w, b, tn=tn, tk=tk)

    y = linear_forward(x, wt_p, b_p, d_out=output_dim, tm=tm, tn=tn, tk=tk)
    jax.block_until_ready(y)

    # Sanity check against pure-JAX reference (nn.Linear semantics).
    y_ref = x @ w.T + b
    assert y.shape == (batch, output_dim)
    assert jnp.allclose(y, y_ref, atol=1e-5, rtol=1e-5)

    print("KERNEL_OK")
</pallas_src>

<mosaic_0001>
module attributes {stable_mosaic.version = 11 : i64} {
  func.func @_linear_kernel_f32(%arg0: i32, %arg1: i32, %arg2: i32, %arg3: memref<8x128xf32, #tpu.memory_space<vmem>>, %arg4: memref<128x128xf32, #tpu.memory_space<vmem>>, %arg5: memref<1x128xf32, #tpu.memory_space<vmem>>, %arg6: memref<8x128xf32, #tpu.memory_space<vmem>>) attributes {dimension_semantics = [#tpu.dimension_semantics<parallel>, #tpu.dimension_semantics<parallel>, #tpu.dimension_semantics<arbitrary>], iteration_bounds = array<i64: 1, 1, 1>, scalar_prefetch = 0 : i64, scratch_operands = 0 : i64, tpu.core_type = #tpu.core_type<tc>, window_params = [{transform_indices = @transform_0, window_bounds = array<i64: 8, 128>}, {transform_indices = @transform_1, window_bounds = array<i64: 128, 128>}, {transform_indices = @transform_2, window_bounds = array<i64: 1, 128>}, {transform_indices = @transform_3, window_bounds = array<i64: 8, 128>}]} {
    %c0_i32 = arith.constant 0 : i32
    %0 = arith.cmpi eq, %arg2, %c0_i32 : i32
    %1 = arith.extui %0 : i1 to i32
    %c0_i32_0 = arith.constant 0 : i32
    %2 = arith.cmpi ne, %1, %c0_i32_0 : i32
    scf.if %2 {
      %c0_8 = arith.constant 0 : index
      %c0_9 = arith.constant 0 : index
      %9 = vector.load %arg5[%c0_8, %c0_9] : memref<1x128xf32, #tpu.memory_space<vmem>>, vector<1x128xf32>
      %10 = vector.shape_cast %9 : vector<1x128xf32> to vector<1x128xf32>
      %11 = vector.broadcast %10 : vector<1x128xf32> to vector<8x128xf32>
      %c0_10 = arith.constant 0 : index
      %c0_11 = arith.constant 0 : index
      %12 = vector.load %arg6[%c0_10, %c0_11] : memref<8x128xf32, #tpu.memory_space<vmem>>, vector<8x128xf32>
      tpu.vector_store %arg6[%c0_10, %c0_11], %11 {strides = array<i32>} : memref<8x128xf32, #tpu.memory_space<vmem>>, vector<8x128xf32>,
    } else {
    }
    %c0 = arith.constant 0 : index
    %c0_1 = arith.constant 0 : index
    %3 = vector.load %arg6[%c0, %c0_1] : memref<8x128xf32, #tpu.memory_space<vmem>>, vector<8x128xf32>
    %c0_2 = arith.constant 0 : index
    %c0_3 = arith.constant 0 : index
    %4 = vector.load %arg3[%c0_2, %c0_3] : memref<8x128xf32, #tpu.memory_space<vmem>>, vector<8x128xf32>
    %c0_4 = arith.constant 0 : index
    %c0_5 = arith.constant 0 : index
    %5 = vector.load %arg4[%c0_4, %c0_5] : memref<128x128xf32, #tpu.memory_space<vmem>>, vector<128x128xf32>
    %cst = arith.constant dense<0.000000e+00> : vector<8x128xf32>
    %6 = tpu.matmul %4, %5, %cst {dimension_numbers = #tpu.dot_dimension_numbers<[1], [0], [0], [1], [0, 0, 1, 1], [], []>} : vector<8x128xf32>, vector<128x128xf32>, vector<8x128xf32> -> vector<8x128xf32>
    %7 = arith.addf %3, %6 : vector<8x128xf32>
    %c0_6 = arith.constant 0 : index
    %c0_7 = arith.constant 0 : index
    %8 = vector.load %arg6[%c0_6, %c0_7] : memref<8x128xf32, #tpu.memory_space<vmem>>, vector<8x128xf32>
    tpu.vector_store %arg6[%c0_6, %c0_7], %7 {strides = array<i32>} : memref<8x128xf32, #tpu.memory_space<vmem>>, vector<8x128xf32>,
    return
  }
  func.func @transform_0(%arg0: i32, %arg1: i32, %arg2: i32) -> (i32, i32) {
    %c0_i32 = arith.constant 0 : i32
    return %arg0, %arg2 : i32, i32
  }
  func.func @transform_1(%arg0: i32, %arg1: i32, %arg2: i32) -> (i32, i32) {
    %c0_i32 = arith.constant 0 : i32
    return %arg2, %arg1 : i32, i32
  }
  func.func @transform_2(%arg0: i32, %arg1: i32, %arg2: i32) -> (i32, i32) {
    %c0_i32 = arith.constant 0 : i32
    %c0_i32_0 = arith.constant 0 : i32
    return %c0_i32, %arg1 : i32, i32
  }
  func.func @transform_3(%arg0: i32, %arg1: i32, %arg2: i32) -> (i32, i32) {
    %c0_i32 = arith.constant 0 : i32
    return %arg0, %arg1 : i32, i32
  }
}

</mosaic_0001>

<llo_original>
// kernel: linear_forward.1
$region0: #{linear_forward.1}
  #allocation0 [shape = 'u32[]', space=smem, size = 0x4, offset = 0x4, fixed_abs, tag = 'smem constant byte address 0x4 - core index']
  #allocation1 [shape = 'u32[72,128]{1,0:T(1,128)}', space=vmem, size = 0x9000, scoped, tag = 'internal scratch']
  %s0 = inlined_call_operand.vmem [shape: f32[8,128], index: 0, kind: input, shape index: {}]
  %s1 = inlined_call_operand.hbm [shape: f32[128,128], index: 1, kind: input, shape index: {}]
  %s2 = inlined_call_operand.vmem [shape: f32[1,128], index: 2, kind: input, shape index: {}]
  %s3 = inlined_call_operand.hbm [shape: f32[8,128], index: 3, kind: output, shape index: {}]
  %s4 = sld [smem:[#allocation0]]
  $region30: #{linear_forward.1} parent=0
    _
  %s6 = ssub.s32 1, %s4
  %s7 = scalar_select 0, %s6, %s4
  $region1: #{linear_forward.1} parent=0
    #allocation2 [shape = 'u8[65536]{0}', space=vmem, size = 0x10000, scoped, tag = 'input window, operand 1, single buffered']
    #allocation3 [shape = 's32[1]{0}', space=sflag, size = 0x4, scoped, tag = 'scoped memory for linear_forward.1']
    #allocation4 [shape = 's32[1]{0}', space=sflag, size = 0x4, scoped, tag = 'scoped memory for linear_forward.1']
    #allocation5 [shape = 'u8[4096]{0}', space=vmem, size = 0x1000, scoped, tag = 'output window, operand 0, single buffered']
    %8 = vsyncpa [#allocation3], 0
    %9 = vsyncpa [#allocation4], 0
    // Predicated region
    $region2: #{linear_forward.1} parent=1 // pred_check
      _
    $region3: #{linear_forward.1} parent=1 // pred_check_branch
      %11 = sbr.rel (0) target = $region5
    $region4: #{linear_forward.1} parent=1 // pred_region
      _
    $region5: #{linear_forward.1} parent=1 // pred_fallthru
      _
    // Predicated region
    $region6: #{linear_forward.1} parent=1 // pred_check
      _
    $region7: #{linear_forward.1} parent=1 // pred_check_branch
      %13 = sbr.rel (0) target = $region9
    $region8: #{linear_forward.1} parent=1 // pred_region
      %15 = vsyncadd [#allocation3], 0
      %s16 = sshll.u32 %s1, 4
      %s17 = int_to_ptr.hbm [resolvable:$true] %s16
      %s18 = sshll.u32 [#allocation2], 4
      %s19 = int_to_ptr.vmem [resolvable:$true] %s18
      %24 = dma.hbm_to_vmem [thread:$0]  %s17, 2048, %s19, [#allocation3], 128, 128, 8
    $region9: #{linear_forward.1} parent=1 // pred_fallthru
      _
    // Predicated region
    $region10: #{linear_forward.1} parent=1 // pred_check
      _
    $region11: #{linear_forward.1} parent=1 // pred_check_branch
      %26 = sbr.rel (0) target = $region13
    $region12: #{linear_forward.1} parent=1 // pred_region
      _
    $region13: #{linear_forward.1} parent=1 // pred_fallthru
      _
    // Predicated region
    $region14: #{linear_forward.1} parent=1 // pred_check
      _
    $region15: #{linear_forward.1} parent=1 // pred_check_branch
      %28 = sbr.rel (0) target = $region17
    $region16: #{linear_forward.1} parent=1 // pred_region
      %30 = dma.done [#allocation3], 2048
    $region17: #{linear_forward.1} parent=1 // pred_fallthru
      _
    %p31 = scmp.eq.s32.totalorder 0, 0
    // Predicated region
    $region18: #{linear_forward.1} parent=1 // pred_check
      %p32 = pneg %p31
    $region19: #{linear_forward.1} parent=1 // pred_check_branch
      %34 = sbr.rel (%p32) target = $region21
    $region20: #{linear_forward.1} parent=1 // pred_region
      %v35 = vld [vmem:[%s2] sm:$0x1]
      %v37 = vperm.slane %v35, 0
      %39 = vst [vmem:[#allocation5] sm:$0xff] %v37
    $region21: #{linear_forward.1} parent=1 // pred_fallthru
      _
    %v40 = vld [vmem:[#allocation5] sm:$0xff]
    %v41 = vld [vmem:[%s0] sm:$0xff]
    %v42 = vld [vmem:[#allocation2] sm:$0xff]
    %v43 = vld [vmem:[#allocation2 + $0x8] sm:$0xff]
    %v44 = vld [vmem:[#allocation2 + $0x10] sm:$0xff]
    %v45 = vld [vmem:[#allocation2 + $0x18] sm:$0xff]
    %v46 = vld [vmem:[#allocation2 + $0x20] sm:$0xff]
    %v47 = vld [vmem:[#allocation2 + $0x28] sm:$0xff]
    %v48 = vld [vmem:[#allocation2 + $0x30] sm:$0xff]
    %v49 = vld [vmem:[#allocation2 + $0x38] sm:$0xff]
    %v50 = vld [vmem:[#allocation2 + $0x40] sm:$0xff]
    %v51 = vld [vmem:[#allocation2 + $0x48] sm:$0xff]
    %v52 = vld [vmem:[#allocation2 + $0x50] sm:$0xff]
    %v53 = vld [vmem:[#allocation2 + $0x58] sm:$0xff]
    %v54 = vld [vmem:[#allocation2 + $0x60] sm:$0xff]
    %v55 = vld [vmem:[#allocation2 + $0x68] sm:$0xff]
    %v56 = vld [vmem:[#allocation2 + $0x70] sm:$0xff]
    %v57 = vld [vmem:[#allocation2 + $0x78] sm:$0xff]
    %58 = vmatpush.msra.mxu0 %v57
    %59 = vmatpush.msra.mxu0 %v56
    %60 = vmatpush.msra.mxu0 %v55
    %61 = vmatpush.msra.mxu0 %v54
    %62 = vmatpush.msra.mxu0 %v53
    %63 = vmatpush.msra.mxu0 %v52
    %64 = vmatpush.msra.mxu0 %v51
    %65 = vmatpush.msra.mxu0 %v50
    %66 = vmatpush.msra.mxu0 %v49
    %67 = vmatpush.msra.mxu0 %v48
    %68 = vmatpush.msra.mxu0 %v47
    %69 = vmatpush.msra.mxu0 %v46
    %70 = vmatpush.msra.mxu0 %v45
    %71 = vmatpush.msra.mxu0 %v44
    %72 = vmatpush.msra.mxu0 %v43
    %73 = vmatpush.msra.mxu0 %v42
    %74 = vmatmul.f32.gmra.mxu0 %v41
    %v75 = vpop.f32.mrf.mxu0
    %v76 = vadd.f32 0.0, %v75
    %77 = vdwg.mxu0
    %v78 = vadd.f32 %v40, %v76
    %79 = vst [vmem:[#allocation5] sm:$0xff] %v78
    // Predicated region
    $region22: #{linear_forward.1} parent=1 // pred_check
      _
    $region23: #{linear_forward.1} parent=1 // pred_check_branch
      %81 = sbr.rel (0) target = $region25
    $region24: #{linear_forward.1} parent=1 // pred_region
      %83 = vsyncadd [#allocation4], 0
      %s85 = sshll.u32 [#allocation5], 4
      %s86 = int_to_ptr.vmem [resolvable:$true] %s85
      %s87 = sshll.u32 %s3, 4
      %s88 = int_to_ptr.hbm [resolvable:$true] %s87
      %90 = dma.vmem_to_hbm [thread:$0]  %s86, 128, %s88, [#allocation4]
    $region25: #{linear_forward.1} parent=1 // pred_fallthru
      _
    // Predicated region
    $region26: #{linear_forward.1} parent=1 // pred_check
      _
    $region27: #{linear_forward.1} parent=1 // pred_check_branch
      %92 = sbr.rel (0) target = $region29
    $region28: #{linear_forward.1} parent=1 // pred_region
      %94 = dma.done [#allocation4], 128
    $region29: #{linear_forward.1} parent=1 // pred_fallthru
      _
    %95 = vsyncpa [#allocation3], 1
    %96 = vsyncpa [#allocation4], 1

</llo_original>
